<compile_context>
chip_gen: v6e
topology: v6e:2x2x1
jax: 0.10.0
libtpu: 0.0.40
codegen_flags: <defaults>
</compile_context>

<pallas_src>
import functools

import jax
import jax.numpy as jnp
from jax.experimental import pallas as pl
from jax.experimental.pallas import tpu as pltpu


def _round_up(x, m):
    return -(-x // m) * m


# -----------------------------------------------------------------------------
# Plain-JAX glue: furthest point sampling, ball query (vectorized), grouping.
# -----------------------------------------------------------------------------
def furthest_point_sample(xyz, npoint):
    """xyz: (B, N, 3) -> (B, npoint) int32 indices (starts at index 0, like the CUDA op)."""
    B, N, _ = xyz.shape

    def body(i, state):
        dist, idxs, farthest = state
        idxs = idxs.at[:, i].set(farthest)
        centroid = jax.vmap(lambda p, f: p[f])(xyz, farthest)          # (B, 3)
        d = jnp.sum((xyz - centroid[:, None, :]) ** 2, axis=-1)        # (B, N)
        dist = jnp.minimum(dist, d)
        farthest = jnp.argmax(dist, axis=-1).astype(jnp.int32)
        return dist, idxs, farthest

    dist0 = jnp.full((B, N), 1e10, jnp.float32)
    idxs0 = jnp.zeros((B, npoint), jnp.int32)
    far0 = jnp.zeros((B,), jnp.int32)
    _, idxs, _ = jax.lax.fori_loop(0, npoint, body, (dist0, idxs0, far0))
    return idxs


def ball_query(radius, nsample, xyz, new_xyz):
    """Vectorized ball query. Returns idx_cnt (B, M) int32 and idx (B, M, nsample)
    int32: first `nsample` in-radius points in index order; empty slots filled
    with the first in-radius index (index 0 if the ball is empty — masked
    downstream via idx_cnt)."""
    d2 = jnp.sum((new_xyz[:, :, None, :] - xyz[:, None, :, :]) ** 2, axis=-1)  # (B,M,N)
    within = d2 < radius * radius
    idx_cnt = jnp.minimum(jnp.sum(within, axis=-1), nsample).astype(jnp.int32)
    first = jnp.argmax(within, axis=-1).astype(jnp.int32)                      # (B, M)
    # Stable argsort puts in-radius indices first, in ascending index order.
    order = jnp.argsort((~within).astype(jnp.int32), axis=-1).astype(jnp.int32)
    idx = order[..., :nsample]                                                 # (B, M, S)
    s_iota = jnp.arange(nsample, dtype=jnp.int32)
    idx = jnp.where(s_iota[None, None, :] < idx_cnt[..., None], idx, first[..., None])
    return idx_cnt, idx


def query_and_group(radius, nsample, xyz, new_xyz, features):
    """QueryAndGroup(use_xyz=True), channels-first layout:
    returns idx_cnt (B, M) and grouped (B, 3+C, nsample, M) — same channel order
    as PyTorch (relative xyz first, then features)."""
    idx_cnt, idx = ball_query(radius, nsample, xyz, new_xyz)                   # (B,M),(B,M,S)
    idx_sm = jnp.transpose(idx, (0, 2, 1))                                     # (B,S,M) (tiny)
    gather = jax.vmap(lambda f, ids: f[:, ids])                                # (C,N),(S,M)->(C,S,M)
    xyz_cf = jnp.transpose(xyz, (0, 2, 1))                                     # (B,3,N) (tiny)
    g_xyz = gather(xyz_cf, idx_sm)                                             # (B,3,S,M)
    g_xyz = g_xyz - jnp.transpose(new_xyz, (0, 2, 1))[:, :, None, :]
    g_feat = gather(features, idx_sm)                                          # (B,C,S,M)
    grouped = jnp.concatenate([g_xyz, g_feat], axis=1)                         # (B,3+C,S,M)
    return idx_cnt, grouped


# -----------------------------------------------------------------------------
# Pallas kernel: two-layer 1x1-conv MLP (BN folded into weights) with nsample
# batched into the matmul lane dim, ReLU, max-pool over nsample via static
# 128-aligned lane slices, idx_cnt mask applied once at the end.
# Block = one (branch, batch, npoint-tile); RHS is a (Cinp, S*TM) slab.
# -----------------------------------------------------------------------------
def _sa_kernel(feats_ref, mask_ref, w1_ref, b1_ref, w2_ref, b2_ref, out_ref, *,
               nsample, tile_m):
    x = feats_ref[0, 0, 0]               # (Cinp, S*TM) bf16 — lane-dense slab
    w1 = w1_ref[0]                       # (C1, Cinp) bf16  (BN scale pre-folded)
    b1 = b1_ref[0]                       # (C1, 1)    f32
    w2 = w2_ref[0]                       # (C2, C1)   bf16
    b2 = b2_ref[0]                       # (C2, 1)    f32

    # One big matmul per layer: N = S*TM keeps the MXU full and amortizes the
    # weight push (vs. 2*S tiny K=8/16 matmuls). Bias added once per layer.
    h = jnp.dot(w1, x, preferred_element_type=jnp.float32) + b1
    h = jnp.maximum(h, 0.0).astype(jnp.bfloat16)                  # (C1, S*TM)
    y = jnp.dot(w2, h, preferred_element_type=jnp.float32) + b2
    y = jnp.maximum(y, 0.0)                                       # (C2, S*TM) f32

    # Max-pool over nsample: static 128-aligned lane slices (no relayout),
    # single carried accumulator.
    acc = y[:, :tile_m]
    for s in range(1, nsample):
        acc = jnp.maximum(acc, y[:, s * tile_m:(s + 1) * tile_m])

    # Mask hoisted after the max: max_s(m*y_s) == m*max_s(y_s) since m in {0,1}.
    out_ref[0] = (acc * mask_ref[0, 0]).astype(out_ref.dtype)     # lane-dense store


def _choose_tile_m(M, S, Cinp, C1, C2, budget_bytes=28 << 20, cap=2048):
    """Largest 128-multiple npoint tile fitting a conservative VMEM budget:
    double-buffered feats/mask/out blocks + in-kernel h/y/acc intermediates.
    Budget sized for v7x's 64 MiB physical VMEM; v5e/v6e (128 MiB) have headroom."""
    per_tm = (2 * (Cinp * S * 2 + 4 + C2 * 4)       # double-buffered blocks
              + C1 * S * 2 + C2 * S * 4 + C2 * 4)   # in-kernel h (bf16), y (f32), acc
    m128 = _round_up(M, 128)
    tm_fit = max(128, (budget_bytes // per_tm) // 128 * 128)
    limit = min(tm_fit, cap)
    if m128 <= limit:
        return int(m128)                             # whole npoint in one tile
    tm = 128
    while tm * 2 <= limit:
        tm *= 2
    return int(tm)


def sa_mlp_pool(feats, mask, w1t, b1, w2t, b2, *, nsample, tile_m):
    """feats (G,B,MT,Cinp,S*TM) bf16, mask (G,B,1,M_pad) f32,
    w1t (G,C1,Cinp) bf16, b1 (G,C1,1) f32, w2t (G,C2,C1) bf16, b2 (G,C2,1) f32
    -> (B, G*C2, M_pad) f32: masked, max-pooled MLP outputs, branch-concatenated
    on the channel axis (PyTorch layout, no post-transpose needed)."""
    G, B, MT, Cinp, STM = feats.shape
    C1 = w1t.shape[1]
    C2 = w2t.shape[1]
    M_pad = mask.shape[-1]
    assert STM == nsample * tile_m and M_pad == MT * tile_m
    assert C2 % 8 == 0, "output channels must be a multiple of 8 (pad mlp spec)"

    per_tm = (2 * (Cinp * nsample * 2 + 4 + C2 * 4)
              + C1 * nsample * 2 + C2 * nsample * 4 + C2 * 4)
    weights_bytes = 2 * ((C1 * Cinp + C2 * C1) * 2 + (C1 + C2) * 4)
    needed = per_tm * tile_m + weights_bytes
    vmem_limit = int(min(max(needed + (8 << 20), 24 << 20), 48 << 20))

    kernel = functools.partial(_sa_kernel, nsample=nsample, tile_m=tile_m)
    return pl.pallas_call(
        kernel,
        out_shape=jax.ShapeDtypeStruct((B, G * C2, M_pad), jnp.float32),
        grid=(G, B, MT),
        in_specs=[
            pl.BlockSpec((1, 1, 1, Cinp, STM), lambda g, b, m: (g, b, m, 0, 0)),
            pl.BlockSpec((1, 1, 1, tile_m), lambda g, b, m: (g, b, 0, m)),
            pl.BlockSpec((1, C1, Cinp), lambda g, b, m: (g, 0, 0)),
            pl.BlockSpec((1, C1, 1), lambda g, b, m: (g, 0, 0)),
            pl.BlockSpec((1, C2, C1), lambda g, b, m: (g, 0, 0)),
            pl.BlockSpec((1, C2, 1), lambda g, b, m: (g, 0, 0)),
        ],
        out_specs=pl.BlockSpec((1, C2, tile_m), lambda g, b, m: (b, g, m)),
        compiler_params=pltpu.CompilerParams(
            dimension_semantics=("parallel", "parallel", "parallel"),
            vmem_limit_bytes=vmem_limit),
    )(feats, mask, w1t, b1, w2t, b2)


# -----------------------------------------------------------------------------
# Parameter / feats prep: fold BN scale into the conv weights (y^T = W^T x^T
# layout), pad Cin, pad npoint, pre-arrange feats so nsample folds into the
# lane axis per npoint tile.
# -----------------------------------------------------------------------------
def _fold_bn_params(branch_params, cinp):
    w1, s1, sh1, w2, s2, sh2 = branch_params   # w:(Cin,C1)/(C1,C2), s/sh:(1,C)
    w1t = (w1 * s1).T                          # (C1, Cin), BN scale folded
    pad = cinp - w1t.shape[1]
    if pad:
        w1t = jnp.pad(w1t, ((0, 0), (0, pad)))
    w2t = (w2 * s2).T                          # (C2, C1)
    return (w1t.astype(jnp.bfloat16), sh1.T.astype(jnp.float32),
            w2t.astype(jnp.bfloat16), sh2.T.astype(jnp.float32))


def _prepare_branch(xyz, new_xyz, features, radius, nsample, branch_params):
    idx_cnt, grouped = query_and_group(radius, nsample, xyz, new_xyz, features)
    B, cin, S, M = grouped.shape
    # bf16 sublane packing: pad Cin to 16 when >8 (v6e/v7x); keep the tiny
    # first-layer Cin at 8 to avoid doubling feats HBM traffic (v5e).
    cinp = _round_up(cin, 8) if cin <= 8 else _round_up(cin, 16)
    if cinp != cin:
        grouped = jnp.pad(grouped, ((0, 0), (0, cinp - cin), (0, 0), (0, 0)))
    w1t, b1, w2t, b2 = _fold_bn_params(branch_params, cinp)
    C1, C2 = w1t.shape[0], w2t.shape[0]

    tile_m = _choose_tile_m(M, S, cinp, C1, C2)
    m_pad = _round_up(M, tile_m)               # lane-dense output tiles (>=128)
    if m_pad != M:
        grouped = jnp.pad(grouped, ((0, 0), (0, 0), (0, 0), (0, m_pad - M)))
    mt = m_pad // tile_m

    # (B, Cinp, S, M_pad) -> (B, MT, Cinp, S*TM): per npoint tile, nsample folds
    # into the trailing lane axis so the kernel RHS is one lane-dense slab.
    feats = (grouped.reshape(B, cinp, S, mt, tile_m)
             .transpose(0, 3, 1, 2, 4)
             .reshape(B, mt, cinp, S * tile_m)
             .astype(jnp.bfloat16))

    mask = (idx_cnt > 0).astype(jnp.float32)[:, None, :]            # (B,1,M)
    if m_pad != M:
        mask = jnp.pad(mask, ((0, 0), (0, 0), (0, m_pad - M)))       # zero -> masked

    return feats, mask, w1t, b1, w2t, b2, S, tile_m


# -----------------------------------------------------------------------------
# Module-equivalent forward (pool_method='max_pool', use_xyz=True, MSG groupers)
# -----------------------------------------------------------------------------
def pointnet_sa_forward(xyz, features, params, npoint, radii, nsamples):
    """xyz: (B,N,3), features: (B,C,N)
    returns new_xyz (B,npoint,3), new_features (B, sum_k C_out_k, npoint)."""
    fps_idx = furthest_point_sample(xyz, npoint)
    new_xyz = jax.vmap(lambda p, ids: p[ids])(xyz, fps_idx)         # (B, npoint, 3)
    branches = [_prepare_branch(xyz, new_xyz, features, r, s, p)
                for (r, s), p in zip(zip(radii, nsamples), params)]
    ref0 = branches[0]
    same = all(br[0].shape == ref0[0].shape and br[2].shape == ref0[2].shape
               and br[4].shape == ref0[4].shape and br[6] == ref0[6]
               and br[7] == ref0[7] for br in branches)
    if same:
        # One pallas_call for all MSG branches: branch is a grid axis and the
        # output blocks land directly in the channel-concatenated layout.
        stacked = [jnp.stack([br[i] for br in branches]) for i in range(6)]
        out = sa_mlp_pool(*stacked, nsample=ref0[6], tile_m=ref0[7])
        new_features = out[:, :, :npoint]
    else:
        outs = []
        for br in branches:
            o = sa_mlp_pool(*(a[None] for a in br[:6]), nsample=br[6], tile_m=br[7])
            outs.append(o[:, :, :npoint])
        new_features = jnp.concatenate(outs, axis=1)
    return new_xyz, new_features


# -----------------------------------------------------------------------------
# Pure-JAX reference (same bf16-at-matmul precision) for correctness checking.
# -----------------------------------------------------------------------------
def reference_forward(xyz, features, params, npoint, radii, nsamples):
    fps_idx = furthest_point_sample(xyz, npoint)
    new_xyz = jax.vmap(lambda p, ids: p[ids])(xyz, fps_idx)
    outs = []
    for (radius, nsample), p in zip(zip(radii, nsamples), params):
        idx_cnt, grouped = query_and_group(radius, nsample, xyz, new_xyz, features)
        w1, s1, sh1, w2, s2, sh2 = p
        w1t = (w1 * s1).T.astype(jnp.bfloat16)
        b1 = sh1.T.astype(jnp.float32)
        w2t = (w2 * s2).T.astype(jnp.bfloat16)
        b2 = sh2.T.astype(jnp.float32)
        x = grouped.astype(jnp.bfloat16)                            # (B,Cin,S,M)
        h = jnp.einsum('kc,bcsm->bksm', w1t, x, preferred_element_type=jnp.float32)
        h = jnp.maximum(h + b1.reshape(1, -1, 1, 1), 0.0).astype(jnp.bfloat16)
        y = jnp.einsum('dk,bksm->bdsm', w2t, h, preferred_element_type=jnp.float32)
        y = jnp.maximum(y + b2.reshape(1, -1, 1, 1), 0.0)
        pooled = jnp.max(y, axis=2)                                 # (B, C2, M)
        mask = (idx_cnt > 0).astype(jnp.float32)[:, None, :]
        outs.append(pooled * mask)
    return new_xyz, jnp.concatenate(outs, axis=1)


# -----------------------------------------------------------------------------
# Deterministic parameter init: Conv2d(1x1, bias=False) weights + BatchNorm
# folded to per-channel scale/shift (eval mode).
# -----------------------------------------------------------------------------
def init_params(key, mlp_specs):
    params = []
    eps = 1e-5
    for spec in mlp_specs:
        p = []
        for cin, cout in zip(spec[:-1], spec[1:]):
            key, k1, k2, k3, k4, k5 = jax.random.split(key, 6)
            w = jax.random.normal(k1, (cin, cout), jnp.float32) * (1.0 / jnp.sqrt(cin))
            gamma = 1.0 + 0.1 * jax.random.normal(k2, (cout,), jnp.float32)
            beta = 0.1 * jax.random.normal(k3, (cout,), jnp.float32)
            mean = 0.1 * jax.random.normal(k4, (cout,), jnp.float32)
            var = jax.random.uniform(k5, (cout,), jnp.float32, minval=0.5, maxval=1.5)
            scale = gamma / jnp.sqrt(var + eps)
            shift = beta - mean * scale
            p.extend([w, scale.reshape(1, cout), shift.reshape(1, cout)])
        params.append(tuple(p))
    return params


if __name__ == "__main__":
    key = jax.random.PRNGKey(0)
    B, N, C = 2, 64, 4
    npoint = 16
    radii = [0.2, 0.4]
    nsamples = [8, 8]
    mlp_specs = [[3 + C, 16, 32], [3 + C, 16, 32]]   # use_xyz=True -> +3 input channels

    key, kx, kf, kp = jax.random.split(key, 4)
    xyz = jax.random.uniform(kx, (B, N, 3), jnp.float32)
    features = jax.random.normal(kf, (B, C, N), jnp.float32)
    params = init_params(kp, mlp_specs)

    new_xyz, new_features = pointnet_sa_forward(xyz, features, params, npoint, radii, nsamples)
    jax.block_until_ready(new_features)

    ref_xyz, ref_features = reference_forward(xyz, features, params, npoint, radii, nsamples)
    assert new_xyz.shape == (B, npoint, 3)
    assert new_features.shape == (B, 32 + 32, npoint)
    assert jnp.allclose(new_xyz, ref_xyz)
    assert jnp.allclose(new_features, ref_features, rtol=2e-3, atol=2e-3)
    print("KERNEL_OK")
</pallas_src>

<mosaic_0001>
module attributes {stable_mosaic.version = 11 : i64} {
  func.func @_sa_kernel(%arg0: i32, %arg1: i32, %arg2: i32, %arg3: memref<1x1x1x8x1024xbf16, #tpu.memory_space<vmem>>, %arg4: memref<1x1x1x128xf32, #tpu.memory_space<vmem>>, %arg5: memref<1x16x8xbf16, #tpu.memory_space<vmem>>, %arg6: memref<1x16x1xf32, #tpu.memory_space<vmem>>, %arg7: memref<1x32x16xbf16, #tpu.memory_space<vmem>>, %arg8: memref<1x32x1xf32, #tpu.memory_space<vmem>>, %arg9: memref<1x32x128xf32, #tpu.memory_space<vmem>>) attributes {dimension_semantics = [#tpu.dimension_semantics<parallel>, #tpu.dimension_semantics<parallel>, #tpu.dimension_semantics<parallel>], iteration_bounds = array<i64: 2, 2, 1>, scalar_prefetch = 0 : i64, scratch_operands = 0 : i64, tpu.core_type = #tpu.core_type<tc>, window_params = [{transform_indices = @transform_0, window_bounds = array<i64: 1, 1, 1, 8, 1024>}, {transform_indices = @transform_1, window_bounds = array<i64: 1, 1, 1, 128>}, {transform_indices = @transform_2, window_bounds = array<i64: 1, 16, 8>}, {transform_indices = @transform_3, window_bounds = array<i64: 1, 16, 1>}, {transform_indices = @transform_4, window_bounds = array<i64: 1, 32, 16>}, {transform_indices = @transform_5, window_bounds = array<i64: 1, 32, 1>}, {transform_indices = @transform_6, window_bounds = array<i64: 1, 32, 128>}]} {
    %c0 = arith.constant 0 : index
    %c0_0 = arith.constant 0 : index
    %c0_1 = arith.constant 0 : index
    %c0_2 = arith.constant 0 : index
    %c0_3 = arith.constant 0 : index
    %0 = vector.load %arg3[%c0, %c0_0, %c0_1, %c0_2, %c0_3] : memref<1x1x1x8x1024xbf16, #tpu.memory_space<vmem>>, vector<1x1x1x8x1024xbf16>
    %1 = vector.shape_cast %0 : vector<1x1x1x8x1024xbf16> to vector<8x1024xbf16>
    %c0_4 = arith.constant 0 : index
    %c0_5 = arith.constant 0 : index
    %c0_6 = arith.constant 0 : index
    %2 = vector.load %arg5[%c0_4, %c0_5, %c0_6] : memref<1x16x8xbf16, #tpu.memory_space<vmem>>, vector<1x16x8xbf16>
    %3 = vector.shape_cast %2 : vector<1x16x8xbf16> to vector<16x8xbf16>
    %c0_7 = arith.constant 0 : index
    %c0_8 = arith.constant 0 : index
    %c0_9 = arith.constant 0 : index
    %4 = vector.load %arg6[%c0_7, %c0_8, %c0_9] : memref<1x16x1xf32, #tpu.memory_space<vmem>>, vector<1x16x1xf32>
    %5 = vector.shape_cast %4 : vector<1x16x1xf32> to vector<16x1xf32>
    %c0_10 = arith.constant 0 : index
    %c0_11 = arith.constant 0 : index
    %c0_12 = arith.constant 0 : index
    %6 = vector.load %arg7[%c0_10, %c0_11, %c0_12] : memref<1x32x16xbf16, #tpu.memory_space<vmem>>, vector<1x32x16xbf16>
    %7 = vector.shape_cast %6 : vector<1x32x16xbf16> to vector<32x16xbf16>
    %c0_13 = arith.constant 0 : index
    %c0_14 = arith.constant 0 : index
    %c0_15 = arith.constant 0 : index
    %8 = vector.load %arg8[%c0_13, %c0_14, %c0_15] : memref<1x32x1xf32, #tpu.memory_space<vmem>>, vector<1x32x1xf32>
    %9 = vector.shape_cast %8 : vector<1x32x1xf32> to vector<32x1xf32>
    %cst = arith.constant dense<0.000000e+00> : vector<16x1024xf32>
    %10 = tpu.matmul %3, %1, %cst {dimension_numbers = #tpu.dot_dimension_numbers<[1], [0], [0], [1], [0, 0, 1, 1], [], []>} : vector<16x8xbf16>, vector<8x1024xbf16>, vector<16x1024xf32> -> vector<16x1024xf32>
    %11 = vector.broadcast %5 : vector<16x1xf32> to vector<16x1024xf32>
    %12 = arith.addf %10, %11 : vector<16x1024xf32>
    %cst_16 = arith.constant 0.000000e+00 : f32
    %13 = vector.broadcast %cst_16 : f32 to vector<16x1024xf32>
    %14 = arith.maximumf %12, %13 : vector<16x1024xf32>
    %15 = arith.truncf %14 : vector<16x1024xf32> to vector<16x1024xbf16>
    %cst_17 = arith.constant dense<0.000000e+00> : vector<32x1024xf32>
    %16 = tpu.matmul %7, %15, %cst_17 {dimension_numbers = #tpu.dot_dimension_numbers<[1], [0], [0], [1], [0, 0, 1, 1], [], []>} : vector<32x16xbf16>, vector<16x1024xbf16>, vector<32x1024xf32> -> vector<32x1024xf32>
    %17 = vector.broadcast %9 : vector<32x1xf32> to vector<32x1024xf32>
    %18 = arith.addf %16, %17 : vector<32x1024xf32>
    %cst_18 = arith.constant 0.000000e+00 : f32
    %19 = vector.broadcast %cst_18 : f32 to vector<32x1024xf32>
    %20 = arith.maximumf %18, %19 : vector<32x1024xf32>
    %21 = vector.extract_strided_slice %20 {offsets = [0, 0], sizes = [32, 128], strides = [1, 1]} : vector<32x1024xf32> to vector<32x128xf32>
    %22 = vector.extract_strided_slice %20 {offsets = [0, 128], sizes = [32, 128], strides = [1, 1]} : vector<32x1024xf32> to vector<32x128xf32>
    %23 = arith.maximumf %21, %22 : vector<32x128xf32>
    %24 = vector.extract_strided_slice %20 {offsets = [0, 256], sizes = [32, 128], strides = [1, 1]} : vector<32x1024xf32> to vector<32x128xf32>
    %25 = arith.maximumf %23, %24 : vector<32x128xf32>
    %26 = vector.extract_strided_slice %20 {offsets = [0, 384], sizes = [32, 128], strides = [1, 1]} : vector<32x1024xf32> to vector<32x128xf32>
    %27 = arith.maximumf %25, %26 : vector<32x128xf32>
    %28 = vector.extract_strided_slice %20 {offsets = [0, 512], sizes = [32, 128], strides = [1, 1]} : vector<32x1024xf32> to vector<32x128xf32>
    %29 = arith.maximumf %27, %28 : vector<32x128xf32>
    %30 = vector.extract_strided_slice %20 {offsets = [0, 640], sizes = [32, 128], strides = [1, 1]} : vector<32x1024xf32> to vector<32x128xf32>
    %31 = arith.maximumf %29, %30 : vector<32x128xf32>
    %32 = vector.extract_strided_slice %20 {offsets = [0, 768], sizes = [32, 128], strides = [1, 1]} : vector<32x1024xf32> to vector<32x128xf32>
    %33 = arith.maximumf %31, %32 : vector<32x128xf32>
    %34 = vector.extract_strided_slice %20 {offsets = [0, 896], sizes = [32, 128], strides = [1, 1]} : vector<32x1024xf32> to vector<32x128xf32>
    %35 = arith.maximumf %33, %34 : vector<32x128xf32>
    %c0_19 = arith.constant 0 : index
    %c0_20 = arith.constant 0 : index
    %c0_21 = arith.constant 0 : index
    %c0_22 = arith.constant 0 : index
    %36 = vector.load %arg4[%c0_19, %c0_20, %c0_21, %c0_22] : memref<1x1x1x128xf32, #tpu.memory_space<vmem>>, vector<1x1x1x128xf32>
    %37 = vector.shape_cast %36 : vector<1x1x1x128xf32> to vector<1x128xf32>
    %38 = vector.broadcast %37 : vector<1x128xf32> to vector<32x128xf32>
    %39 = arith.mulf %35, %38 : vector<32x128xf32>
    %c0_23 = arith.constant 0 : index
    %c0_24 = arith.constant 0 : index
    %c0_25 = arith.constant 0 : index
    %40 = vector.load %arg9[%c0_23, %c0_24, %c0_25] : memref<1x32x128xf32, #tpu.memory_space<vmem>>, vector<1x32x128xf32>
    %41 = vector.shape_cast %40 : vector<1x32x128xf32> to vector<32x128xf32>
    %42 = vector.shape_cast %39 : vector<32x128xf32> to vector<1x32x128xf32>
    tpu.vector_store %arg9[%c0_23, %c0_24, %c0_25], %42 {strides = array<i32>} : memref<1x32x128xf32, #tpu.memory_space<vmem>>, vector<1x32x128xf32>,
    return
  }
  func.func @transform_0(%arg0: i32, %arg1: i32, %arg2: i32) -> (i32, i32, i32, i32, i32) {
    %c0_i32 = arith.constant 0 : i32
    %c0_i32_0 = arith.constant 0 : i32
    %c0_i32_1 = arith.constant 0 : i32
    return %arg0, %arg1, %arg2, %c0_i32, %c0_i32_0 : i32, i32, i32, i32, i32
  }
  func.func @transform_1(%arg0: i32, %arg1: i32, %arg2: i32) -> (i32, i32, i32, i32) {
    %c0_i32 = arith.constant 0 : i32
    %c0_i32_0 = arith.constant 0 : i32
    return %arg0, %arg1, %c0_i32, %arg2 : i32, i32, i32, i32
  }
  func.func @transform_2(%arg0: i32, %arg1: i32, %arg2: i32) -> (i32, i32, i32) {
    %c0_i32 = arith.constant 0 : i32
    %c0_i32_0 = arith.constant 0 : i32
    %c0_i32_1 = arith.constant 0 : i32
    return %arg0, %c0_i32, %c0_i32_0 : i32, i32, i32
  }
  func.func @transform_3(%arg0: i32, %arg1: i32, %arg2: i32) -> (i32, i32, i32) {
    %c0_i32 = arith.constant 0 : i32
    %c0_i32_0 = arith.constant 0 : i32
    %c0_i32_1 = arith.constant 0 : i32
    return %arg0, %c0_i32, %c0_i32_0 : i32, i32, i32
  }
  func.func @transform_4(%arg0: i32, %arg1: i32, %arg2: i32) -> (i32, i32, i32) {
    %c0_i32 = arith.constant 0 : i32
    %c0_i32_0 = arith.constant 0 : i32
    %c0_i32_1 = arith.constant 0 : i32
    return %arg0, %c0_i32, %c0_i32_0 : i32, i32, i32
  }
  func.func @transform_5(%arg0: i32, %arg1: i32, %arg2: i32) -> (i32, i32, i32) {
    %c0_i32 = arith.constant 0 : i32
    %c0_i32_0 = arith.constant 0 : i32
    %c0_i32_1 = arith.constant 0 : i32
    return %arg0, %c0_i32, %c0_i32_0 : i32, i32, i32
  }
  func.func @transform_6(%arg0: i32, %arg1: i32, %arg2: i32) -> (i32, i32, i32) {
    %c0_i32 = arith.constant 0 : i32
    return %arg1, %arg0, %arg2 : i32, i32, i32
  }
}

</mosaic_0001>

<llo_original>
// kernel: tpu_custom_call.1
$region0: #{tpu_custom_call.1}
  #allocation0 [shape = 'u32[]', space=smem, size = 0x4, offset = 0x4, fixed_abs, tag = 'smem constant byte address 0x4 - core index']
  #allocation1 [shape = 'u32[144,128]{1,0:T(1,128)}', space=vmem, size = 0x12000, scoped, tag = 'internal scratch']
  %s0 = inlined_call_operand.vmem [shape: bf16[2,2,1,8,1024], index: 0, kind: input, shape index: {}]
  %s1 = inlined_call_operand.vmem [shape: f32[2,2,1,128], index: 1, kind: input, shape index: {}]
  %s2 = inlined_call_operand.vmem [shape: bf16[2,16,8], index: 2, kind: input, shape index: {}]
  %s3 = inlined_call_operand.vmem [shape: f32[2,16,1], index: 3, kind: input, shape index: {}]
  %s4 = inlined_call_operand.vmem [shape: bf16[2,32,16], index: 4, kind: input, shape index: {}]
  %s5 = inlined_call_operand.vmem [shape: f32[2,32,1], index: 5, kind: input, shape index: {}]
  %s6 = inlined_call_operand.hbm [shape: f32[2,64,128], index: 6, kind: output, shape index: {}]
  %s7 = sld [smem:[#allocation0]]
  $region57: #{tpu_custom_call.1} parent=0
    _
  %s9 = ssub.s32 1, %s7
  %s10 = scalar_select 0, %s9, %s7
  $region1: #{tpu_custom_call.1} parent=0
    #allocation2 [shape = 'u8[32768]{0}', space=vmem, size = 0x8000, scoped, tag = 'output window, operand 0']
    #allocation3 [shape = 's32[2]{0}', space=sflag, size = 0x8, scoped, tag = 'scoped memory for tpu_custom_call.1']
    %11 = vsyncpa [#allocation3], 0
    %s12 = scalar_lea.sflag [#allocation3], 1
    %13 = vsyncpa %s12, 0
    loop: start=0, step=1, limit=6
    $region2: #{tpu_custom_call.1} parent=1 // loop_pre_header
      _
    $region3: #{tpu_custom_call.1} parent=1 // loop_header
      %s15 = sphi 0, %s19
      %p16 = scmp.ge.s32.totalorder %s15, 6
      %s22 = sphi 0, %s41
      %s23 = sphi 0, %s37
      %s24 = sphi 0, %s33
      %s25 = sphi 0, %s22
      %s26 = sphi 0, %s23
      %s27 = sphi 0, %s24
      %s28 = sphi 0, %s25
      %s29 = sphi 0, %s26
      %s30 = sphi 0, %s27
      %s48 = sphi 0, %s50
      %s51 = sphi 0, %s48
      %s52 = sphi 0, %s51
      %s68 = sphi 0, %s52
      %s78 = sphi 0, %s80
      %s81 = sphi 0, %s78
      %s82 = sphi 0, %s81
      %s98 = sphi 0, %s82
      %s104 = sphi 0, %s106
      %s107 = sphi 0, %s104
      %s108 = sphi 0, %s107
      %s124 = sphi 0, %s108
      %s130 = sphi 0, %s132
      %s133 = sphi 0, %s130
      %s134 = sphi 0, %s133
      %s150 = sphi 0, %s134
      %s156 = sphi 0, %s158
      %s159 = sphi 0, %s156
      %s160 = sphi 0, %s159
      %s176 = sphi 0, %s160
      %s182 = sphi 0, %s184
      %s185 = sphi 0, %s182
      %s186 = sphi 0, %s185
      %s202 = sphi 0, %s186
      %s212 = sphi 0, %s214
      %s215 = sphi 0, %s212
      %s216 = sphi 0, %s215
      %s232 = sphi 0, %s216
    $region4: #{tpu_custom_call.1} parent=1 // loop_header_branch
      %18 = sbr.rel (%p16) target = $region8
    $region5: #{tpu_custom_call.1} parent=1 // loop_body
      %s20 = ssub.s32 %s15, 1
      %s21 = ssub.s32 %s15, 2
      %s31 = sadd.s32 1, %s24
      %p32 = scmp.ge.s32.totalorder %s31, 1
      %s33 = scalar_select %p32, 0, %s31
      %s34 = sadd.s32 1, %s23
      %s35 = scalar_select %p32, %s34, %s23
      %p36 = scmp.ge.s32.totalorder %s35, 2
      %s37 = scalar_select %p36, 0, %s35
      %s38 = sadd.s32 1, %s22
      %s39 = scalar_select %p36, %s38, %s22
      %p40 = scmp.ge.s32.totalorder %s39, 2
      %s41 = scalar_select %p40, 0, %s39
      %s42 = ssub.s32 %s22, %s41
      %s43 = ssub.s32 %s23, %s37
      %s44 = sor.u32 %s42, %s43
      %s45 = ssub.s32 %s24, %s33
      %s46 = sor.u32 %s44, %s45
      %p47 = scmp.eq.s32.totalorder %s46, 0
      %s49 = sadd.s32 %s48, 1
      %s50 = scalar_select %p47, %s48, %s49
      %p53 = pneg %p47
      %p54 = scmp.eq.s32.totalorder %s15, 3
      %p55 = por %p53, %p54
      %p56 = scmp.ne.s32.totalorder %s48, %s51
      %p57 = scmp.eq.s32.totalorder %s15, 0
      %p58 = por %p56, %p57
      %p59 = scmp.ne.s32.totalorder %s48, %s51
      %p60 = scmp.eq.s32.totalorder %s20, 3
      %p61 = por %p59, %p60
      %p62 = scmp.ne.s32.totalorder %s51, %s52
      %p63 = scmp.eq.s32.totalorder %s20, 0
      %p64 = por %p62, %p63
      %p65 = scmp.ne.s32.totalorder %s51, %s52
      %p66 = scmp.eq.s32.totalorder %s21, 3
      %p67 = por %p65, %p66
      %p69 = scmp.ne.s32.totalorder %s52, %s68
      %p70 = scmp.eq.s32.totalorder %s21, 0
      %p71 = por %p69, %p70
      %s72 = ssub.s32 %s22, %s41
      %s73 = ssub.s32 %s23, %s37
      %s74 = sor.u32 %s72, %s73
      %s75 = ssub.s32 %s24, %s33
      %s76 = sor.u32 %s74, %s75
      %p77 = scmp.eq.s32.totalorder %s76, 0
      %s79 = sadd.s32 %s78, 1
      %s80 = scalar_select %p77, %s78, %s79
      %p83 = pneg %p77
      %p84 = scmp.eq.s32.totalorder %s15, 3
      %p85 = por %p83, %p84
      %p86 = scmp.ne.s32.totalorder %s78, %s81
      %p87 = scmp.eq.s32.totalorder %s15, 0
      %p88 = por %p86, %p87
      %p89 = scmp.ne.s32.totalorder %s78, %s81
      %p90 = scmp.eq.s32.totalorder %s20, 3
      %p91 = por %p89, %p90
      %p92 = scmp.ne.s32.totalorder %s81, %s82
      %p93 = scmp.eq.s32.totalorder %s20, 0
      %p94 = por %p92, %p93
      %p95 = scmp.ne.s32.totalorder %s81, %s82
      %p96 = scmp.eq.s32.totalorder %s21, 3
      %p97 = por %p95, %p96
      %p99 = scmp.ne.s32.totalorder %s82, %s98
      %p100 = scmp.eq.s32.totalorder %s21, 0
      %p101 = por %p99, %p100
      %s102 = ssub.s32 %s22, %s41
      %p103 = scmp.eq.s32.totalorder %s102, 0
      %s105 = sadd.s32 %s104, 1
      %s106 = scalar_select %p103, %s104, %s105
      %p109 = pneg %p103
      %p110 = scmp.eq.s32.totalorder %s15, 3
      %p111 = por %p109, %p110
      %p112 = scmp.ne.s32.totalorder %s104, %s107
      %p113 = scmp.eq.s32.totalorder %s15, 0
      %p114 = por %p112, %p113
      %p115 = scmp.ne.s32.totalorder %s104, %s107
      %p116 = scmp.eq.s32.totalorder %s20, 3
      %p117 = por %p115, %p116
      %p118 = scmp.ne.s32.totalorder %s107, %s108
      %p119 = scmp.eq.s32.totalorder %s20, 0
      %p120 = por %p118, %p119
      %p121 = scmp.ne.s32.totalorder %s107, %s108
      %p122 = scmp.eq.s32.totalorder %s21, 3
      %p123 = por %p121, %p122
      %p125 = scmp.ne.s32.totalorder %s108, %s124
      %p126 = scmp.eq.s32.totalorder %s21, 0
      %p127 = por %p125, %p126
      %s128 = ssub.s32 %s22, %s41
      %p129 = scmp.eq.s32.totalorder %s128, 0
      %s131 = sadd.s32 %s130, 1
      %s132 = scalar_select %p129, %s130, %s131
      %p135 = pneg %p129
      %p136 = scmp.eq.s32.totalorder %s15, 3
      %p137 = por %p135, %p136
      %p138 = scmp.ne.s32.totalorder %s130, %s133
      %p139 = scmp.eq.s32.totalorder %s15, 0
      %p140 = por %p138, %p139
      %p141 = scmp.ne.s32.totalorder %s130, %s133
      %p142 = scmp.eq.s32.totalorder %s20, 3
      %p143 = por %p141, %p142
      %p144 = scmp.ne.s32.totalorder %s133, %s134
      %p145 = scmp.eq.s32.totalorder %s20, 0
      %p146 = por %p144, %p145
      %p147 = scmp.ne.s32.totalorder %s133, %s134
      %p148 = scmp.eq.s32.totalorder %s21, 3
      %p149 = por %p147, %p148
      %p151 = scmp.ne.s32.totalorder %s134, %s150
      %p152 = scmp.eq.s32.totalorder %s21, 0
      %p153 = por %p151, %p152
      %s154 = ssub.s32 %s22, %s41
      %p155 = scmp.eq.s32.totalorder %s154, 0
      %s157 = sadd.s32 %s156, 1
      %s158 = scalar_select %p155, %s156, %s157
      %p161 = pneg %p155
      %p162 = scmp.eq.s32.totalorder %s15, 3
      %p163 = por %p161, %p162
      %p164 = scmp.ne.s32.totalorder %s156, %s159
      %p165 = scmp.eq.s32.totalorder %s15, 0
      %p166 = por %p164, %p165
      %p167 = scmp.ne.s32.totalorder %s156, %s159
      %p168 = scmp.eq.s32.totalorder %s20, 3
      %p169 = por %p167, %p168
      %p170 = scmp.ne.s32.totalorder %s159, %s160
      %p171 = scmp.eq.s32.totalorder %s20, 0
      %p172 = por %p170, %p171
      %p173 = scmp.ne.s32.totalorder %s159, %s160
      %p174 = scmp.eq.s32.totalorder %s21, 3
      %p175 = por %p173, %p174
      %p177 = scmp.ne.s32.totalorder %s160, %s176
      %p178 = scmp.eq.s32.totalorder %s21, 0
      %p179 = por %p177, %p178
      %s180 = ssub.s32 %s22, %s41
      %p181 = scmp.eq.s32.totalorder %s180, 0
      %s183 = sadd.s32 %s182, 1
      %s184 = scalar_select %p181, %s182, %s183
      %p187 = pneg %p181
      %p188 = scmp.eq.s32.totalorder %s15, 3
      %p189 = por %p187, %p188
      %p190 = scmp.ne.s32.totalorder %s182, %s185
      %p191 = scmp.eq.s32.totalorder %s15, 0
      %p192 = por %p190, %p191
      %p193 = scmp.ne.s32.totalorder %s182, %s185
      %p194 = scmp.eq.s32.totalorder %s20, 3
      %p195 = por %p193, %p194
      %p196 = scmp.ne.s32.totalorder %s185, %s186
      %p197 = scmp.eq.s32.totalorder %s20, 0
      %p198 = por %p196, %p197
      %p199 = scmp.ne.s32.totalorder %s185, %s186
      %p200 = scmp.eq.s32.totalorder %s21, 3
      %p201 = por %p199, %p200
      %p203 = scmp.ne.s32.totalorder %s186, %s202
      %p204 = scmp.eq.s32.totalorder %s21, 0
      %p205 = por %p203, %p204
      %s206 = ssub.s32 %s23, %s37
      %s207 = ssub.s32 %s22, %s41
      %s208 = sor.u32 %s206, %s207
      %s209 = ssub.s32 %s24, %s33
      %s210 = sor.u32 %s208, %s209
      %p211 = scmp.eq.s32.totalorder %s210, 0
      %s213 = sadd.s32 %s212, 1
      %s214 = scalar_select %p211, %s212, %s213
      %p217 = pneg %p211
      %p218 = scmp.eq.s32.totalorder %s15, 3
      %p219 = por %p217, %p218
      %p220 = scmp.ne.s32.totalorder %s212, %s215
      %p221 = scmp.eq.s32.totalorder %s15, 0
      %p222 = por %p220, %p221
      %p223 = scmp.ne.s32.totalorder %s212, %s215
      %p224 = scmp.eq.s32.totalorder %s20, 3
      %p225 = por %p223, %p224
      %p226 = scmp.ne.s32.totalorder %s215, %s216
      %p227 = scmp.eq.s32.totalorder %s20, 0
      %p228 = por %p226, %p227
      %p229 = scmp.ne.s32.totalorder %s215, %s216
      %p230 = scmp.eq.s32.totalorder %s21, 3
      %p231 = por %p229, %p230
      %p233 = scmp.ne.s32.totalorder %s216, %s232
      %p234 = scmp.eq.s32.totalorder %s21, 0
      %p235 = por %p233, %p234
      %p236 = scmp.le.s32.totalorder 1, %s15
      %p237 = scmp.lt.s32.totalorder %s15, 5
      %p238 = pnand %p236, %p237
      %p239 = pneg %p238
      // Predicated region
      $region9: #{tpu_custom_call.1} parent=5 // pred_check
        _
      $region10: #{tpu_custom_call.1} parent=5 // pred_check_branch
        %241 = sbr.rel (%p238) target = $region12
      $region11: #{tpu_custom_call.1} parent=5 // pred_region
        %s242 = ssub.s32 %s15, 1
      $region12: #{tpu_custom_call.1} parent=5 // pred_fallthru
        _
      %p243 = scmp.lt.s32.totalorder %s15, 4
      // Predicated region
      $region13: #{tpu_custom_call.1} parent=5 // pred_check
        %p244 = pneg %p243
      $region14: #{tpu_custom_call.1} parent=5 // pred_check_branch
        %246 = sbr.rel (%p244) target = $region16
      $region15: #{tpu_custom_call.1} parent=5 // pred_region
        // Predicated region
        $region17: #{tpu_custom_call.1} parent=15 // pred_check
          %p247 = pneg %p58
        $region18: #{tpu_custom_call.1} parent=15 // pred_check_branch
          %249 = sbr.rel (%p247) target = $region20
        $region19: #{tpu_custom_call.1} parent=15 // pred_region
          %p250 = scmp.lt.s32.totalorder %s22, 1
          %s251 = scalar_select %p250, %s22, 1
          %p252 = scmp.lt.s32.totalorder %s23, 1
          %s253 = scalar_select %p252, %s23, 1
          %p254 = scmp.lt.s32.totalorder %s24, 0
          %s255 = scalar_select %p254, %s24, 0
          %s256 = smul.addr %s255, 8
          %s257 = smul.addr %s253, 8
          %s258 = sadd.s32 %s256, %s257
          %s259 = smul.addr %s251, 16
          %s260 = sadd.s32 %s258, %s259
          %s261 = smul.addr %s260, 4
          %s262 = scalar_lea.vmem %s0, %s261
        $region20: #{tpu_custom_call.1} parent=15 // pred_fallthru
          _
        // Predicated region
        $region21: #{tpu_custom_call.1} parent=15 // pred_check
          %p263 = pneg %p88
        $region22: #{tpu_custom_call.1} parent=15 // pred_check_branch
          %265 = sbr.rel (%p263) target = $region24
        $region23: #{tpu_custom_call.1} parent=15 // pred_region
          %p266 = scmp.lt.s32.totalorder %s22, 1
          %s267 = scalar_select %p266, %s22, 1
          %p268 = scmp.lt.s32.totalorder %s23, 1
          %s269 = scalar_select %p268, %s23, 1
          %p270 = scmp.lt.s32.totalorder %s24, 0
          %s271 = scalar_select %p270, %s24, 0
          %s272 = sadd.s32 %s271, %s269
          %s273 = smul.addr %s267, 2
          %s274 = sadd.s32 %s272, %s273
          %s275 = scalar_lea.vmem %s1, %s274
        $region24: #{tpu_custom_call.1} parent=15 // pred_fallthru
          _
        // Predicated region
        $region25: #{tpu_custom_call.1} parent=15 // pred_check
          %p276 = pneg %p114
        $region26: #{tpu_custom_call.1} parent=15 // pred_check_branch
          %278 = sbr.rel (%p276) target = $region28
        $region27: #{tpu_custom_call.1} parent=15 // pred_region
          %p279 = scmp.lt.s32.totalorder %s22, 1
          %s280 = scalar_select %p279, %s22, 1
          %s281 = smul.addr %s280, 2
          %s282 = smul.addr %s281, 4
          %s283 = scalar_lea.vmem %s2, %s282
        $region28: #{tpu_custom_call.1} parent=15 // pred_fallthru
          _
        // Predicated region
        $region29: #{tpu_custom_call.1} parent=15 // pred_check
          %p284 = pneg %p140
        $region30: #{tpu_custom_call.1} parent=15 // pred_check_branch
          %286 = sbr.rel (%p284) target = $region32
        $region31: #{tpu_custom_call.1} parent=15 // pred_region
          %p287 = scmp.lt.s32.totalorder %s22, 1
          %s288 = scalar_select %p287, %s22, 1
          %s289 = smul.addr %s288, 2
          %s290 = smul.addr %s289, 8
          %s291 = scalar_lea.vmem %s3, %s290
        $region32: #{tpu_custom_call.1} parent=15 // pred_fallthru
          _
        // Predicated region
        $region33: #{tpu_custom_call.1} parent=15 // pred_check
          %p292 = pneg %p166
        $region34: #{tpu_custom_call.1} parent=15 // pred_check_branch
          %294 = sbr.rel (%p292) target = $region36
        $region35: #{tpu_custom_call.1} parent=15 // pred_region
          %p295 = scmp.lt.s32.totalorder %s22, 1
          %s296 = scalar_select %p295, %s22, 1
          %s297 = smul.addr %s296, 4
          %s298 = smul.addr %s297, 4
          %s299 = scalar_lea.vmem %s4, %s298
        $region36: #{tpu_custom_call.1} parent=15 // pred_fallthru
          _
        // Predicated region
        $region37: #{tpu_custom_call.1} parent=15 // pred_check
          %p300 = pneg %p192
        $region38: #{tpu_custom_call.1} parent=15 // pred_check_branch
          %302 = sbr.rel (%p300) target = $region40
        $region39: #{tpu_custom_call.1} parent=15 // pred_region
          %p303 = scmp.lt.s32.totalorder %s22, 1
          %s304 = scalar_select %p303, %s22, 1
          %s305 = smul.addr %s304, 4
          %s306 = smul.addr %s305, 8
          %s307 = scalar_lea.vmem %s5, %s306
        $region40: #{tpu_custom_call.1} parent=15 // pred_fallthru
          _
      $region16: #{tpu_custom_call.1} parent=5 // pred_fallthru
        _
      %p308 = scmp.le.s32.totalorder 1, %s15
      %p309 = scmp.lt.s32.totalorder %s15, 5
      %p310 = pnand %p308, %p309
      %p311 = pneg %p310
      // Predicated region
      $region41: #{tpu_custom_call.1} parent=5 // pred_check
        _
      $region42: #{tpu_custom_call.1} parent=5 // pred_check_branch
        %313 = sbr.rel (%p310) target = $region44
      $region43: #{tpu_custom_call.1} parent=5 // pred_region
        %s314 = ssub.s32 %s15, 1
        %p315 = scmp.lt.s32.totalorder %s25, 1
        %s316 = scalar_select %p315, %s25, 1
        %p317 = scmp.lt.s32.totalorder %s26, 1
        %s318 = scalar_select %p317, %s26, 1
        %p319 = scmp.lt.s32.totalorder %s27, 0
        %s320 = scalar_select %p319, %s27, 0
        %s321 = smul.addr %s320, 8
        %s322 = smul.addr %s318, 8
        %s323 = sadd.s32 %s321, %s322
        %s324 = smul.addr %s316, 16
        %s325 = sadd.s32 %s323, %s324
        %s326 = smul.addr %s325, 4
        %s327 = scalar_lea.vmem %s0, %s326
        %p328 = pneg %p64
        %p329 = pneg %p61
        %p330 = scmp.lt.s32.totalorder %s25, 1
        %s331 = scalar_select %p330, %s25, 1
        %p332 = scmp.lt.s32.totalorder %s26, 1
        %s333 = scalar_select %p332, %s26, 1
        %p334 = scmp.lt.s32.totalorder %s27, 0
        %s335 = scalar_select %p334, %s27, 0
        %s336 = sadd.s32 %s335, %s333
        %s337 = smul.addr %s331, 2
        %s338 = sadd.s32 %s336, %s337
        %s339 = scalar_lea.vmem %s1, %s338
        %p340 = pneg %p94
        %p341 = pneg %p91
        %p342 = scmp.lt.s32.totalorder %s25, 1
        %s343 = scalar_select %p342, %s25, 1
        %s344 = smul.addr %s343, 2
        %s345 = smul.addr %s344, 4
        %s346 = scalar_lea.vmem %s2, %s345
        %p347 = pneg %p120
        %p348 = pneg %p117
        %p349 = scmp.lt.s32.totalorder %s25, 1
        %s350 = scalar_select %p349, %s25, 1
        %s351 = smul.addr %s350, 2
        %s352 = smul.addr %s351, 8
        %s353 = scalar_lea.vmem %s3, %s352
        %p354 = pneg %p146
        %p355 = pneg %p143
        %p356 = scmp.lt.s32.totalorder %s25, 1
        %s357 = scalar_select %p356, %s25, 1
        %s358 = smul.addr %s357, 4
        %s359 = smul.addr %s358, 4
        %s360 = scalar_lea.vmem %s4, %s359
        %p361 = pneg %p172
        %p362 = pneg %p169
        %p363 = scmp.lt.s32.totalorder %s25, 1
        %s364 = scalar_select %p363, %s25, 1
        %s365 = smul.addr %s364, 4
        %s366 = smul.addr %s365, 8
        %s367 = scalar_lea.vmem %s5, %s366
        %p368 = pneg %p198
        %p369 = pneg %p195
        %p370 = pneg %p228
        %p371 = pneg %p225
        %s372 = sand.u32 %s215, 1
        %s373 = scalar_lea.sflag [#allocation3], %s372
        %s374 = sand.u32 %s215, 1
        %s375 = smul.addr %s374, 32
        %s376 = scalar_lea.vmem [#allocation2], %s375
        %p377 = scmp.lt.s32.totalorder %s25, 1
        %s378 = scalar_select %p377, %s25, 1
        %p379 = scmp.lt.s32.totalorder %s26, 1
        %s380 = scalar_select %p379, %s26, 1
        %p381 = scmp.lt.s32.totalorder %s27, 0
        %s382 = scalar_select %p381, %s27, 0
        %s383 = smul.addr %s382, 8
        %s384 = smul.addr %s380, 8
        %s385 = sadd.s32 %s383, %s384
        %s386 = smul.addr %s378, 16
        %s387 = sadd.s32 %s385, %s386
        %s388 = smul.addr %s387, 4
        %s389 = scalar_lea.vmem %s0, %s388
        %p390 = scmp.lt.s32.totalorder %s25, 1
        %s391 = scalar_select %p390, %s25, 1
        %p392 = scmp.lt.s32.totalorder %s26, 1
        %s393 = scalar_select %p392, %s26, 1
        %p394 = scmp.lt.s32.totalorder %s27, 0
        %s395 = scalar_select %p394, %s27, 0
        %s396 = sadd.s32 %s395, %s393
        %s397 = smul.addr %s391, 2
        %s398 = sadd.s32 %s396, %s397
        %s399 = scalar_lea.vmem %s1, %s398
        %p400 = scmp.lt.s32.totalorder %s25, 1
        %s401 = scalar_select %p400, %s25, 1
        %s402 = smul.addr %s401, 2
        %s403 = smul.addr %s402, 4
        %s404 = scalar_lea.vmem %s2, %s403
        %p405 = scmp.lt.s32.totalorder %s25, 1
        %s406 = scalar_select %p405, %s25, 1
        %s407 = smul.addr %s406, 2
        %s408 = smul.addr %s407, 8
        %s409 = scalar_lea.vmem %s3, %s408
        %p410 = scmp.lt.s32.totalorder %s25, 1
        %s411 = scalar_select %p410, %s25, 1
        %s412 = smul.addr %s411, 4
        %s413 = smul.addr %s412, 4
        %s414 = scalar_lea.vmem %s4, %s413
        %p415 = scmp.lt.s32.totalorder %s25, 1
        %s416 = scalar_select %p415, %s25, 1
        %s417 = smul.addr %s416, 4
        %s418 = smul.addr %s417, 8
        %s419 = scalar_lea.vmem %s5, %s418
        %s420 = smul.u32 4, %s25
        %v422 = vld [vmem:[%s389] sm:$0xff]
        %v423 = vld [vmem:[%s389 + $0x8] sm:$0xff]
        %v424 = vld [vmem:[%s389 + $0x10] sm:$0xff]
        %v425 = vld [vmem:[%s389 + $0x18] sm:$0xff]
        %v426 = vld [vmem:[%s404] sm:$0xf]
        %v427 = vld [vmem:[%s404 + $0x4] sm:$0xf]
        %v428 = vld [vmem:[%s409] sm:$0xff]
        %v429 = vld [vmem:[%s409 + $0x8] sm:$0xff]
        %v430 = vld [vmem:[%s414] sm:$0xf]
        %v431 = vld [vmem:[%s414 + $0x4] sm:$0xf]
        %v432 = vld [vmem:[%s414 + $0x8] sm:$0xf]
        %v433 = vld [vmem:[%s414 + $0xc] sm:$0xf]
        %v434 = vld [vmem:[%s419] sm:$0xff]
        %v435 = vld [vmem:[%s419 + $0x8] sm:$0xff]
        %v436 = vld [vmem:[%s419 + $0x10] sm:$0xff]
        %v437 = vld [vmem:[%s419 + $0x18] sm:$0xff]
        %439 = vset.pattern.permute.xlu0 0
        %440 = vperm.xlu0 %439, %v428
        %v441 = vpop.permute.xlu0 %440
        %444 = vset.pattern.permute.xlu0 0
        %445 = vperm.xlu0 %444, %v429
        %v446 = vpop.permute.xlu0 %445
        %v450 = vunpack.c.l.b16 %v426
        %v451 = vunpack.c.l.b16 %v427
        %v452 = vpack.c.b16 %v451, %v450
        %v457 = vunpack.c.l.b16 %v422
        %v458 = vunpack.c.h.b16 %v422
        %v459 = vunpack.c.l.b16 %v423
        %v460 = vunpack.c.h.b16 %v423
        %v461 = vunpack.c.l.b16 %v424
        %v462 = vunpack.c.h.b16 %v424
        %v463 = vunpack.c.l.b16 %v425
        %v464 = vunpack.c.h.b16 %v425
        %v465 = vpack.c.b16 %v457, %v457
        %v466 = vpack.c.b16 %v458, %v458
        %v467 = vpack.c.b16 %v459, %v459
        %v468 = vpack.c.b16 %v460, %v460
        %v469 = vpack.c.b16 %v461, %v461
        %v470 = vpack.c.b16 %v462, %v462
        %v471 = vpack.c.b16 %v463, %v463
        %v472 = vpack.c.b16 %v464, %v464
        %vm473 = vcmask 64512
        %v475 = vsel %vm473, %v452, 0
        %vm477 = vcmask 1043456
        %v479 = vsel %vm477, %v465, 0
        %v482 = vsel %vm477, %v466, 0
        %v485 = vsel %vm477, %v467, 0
        %v488 = vsel %vm477, %v468, 0
        %v491 = vsel %vm477, %v469, 0
        %v494 = vsel %vm477, %v470, 0
        %v497 = vsel %vm477, %v471, 0
        %v500 = vsel %vm477, %v472, 0
        %502 = vmatprep.subr.bf16.mxu0 0
        %503 = vmatpush1.bf16.msra.mxu0 0
        %504 = vmatprep.subr.bf16.mxu0 0
        %505 = vmatpush1.bf16.msra.mxu0 0
        %506 = vmatprep.subr.bf16.mxu0 0
        %507 = vmatpush1.bf16.msra.mxu0 0
        %508 = vmatprep.subr.bf16.mxu0 0
        %509 = vmatpush1.bf16.msra.mxu0 0
        %510 = vmatprep.subr.bf16.mxu0 0
        %511 = vmatpush1.bf16.msra.mxu0 0
        %512 = vmatprep.subr.bf16.mxu0 0
        %513 = vmatpush1.bf16.msra.mxu0 0
        %514 = vmatprep.subr.bf16.mxu0 0
        %515 = vmatpush1.bf16.msra.mxu0 0
        %516 = vmatprep.subr.bf16.mxu0 %v482
        %517 = vmatpush1.bf16.msra.mxu0 %v479
        %518 = vmatprep.subr.bf16.mxu0 0
        %519 = vmatpush2.bf16.msra.mxu0 0
        %520 = vmatprep.subr.bf16.mxu0 0
        %521 = vmatpush2.bf16.msra.mxu0 0
        %522 = vmatprep.subr.bf16.mxu0 0
        %523 = vmatpush2.bf16.msra.mxu0 0
        %524 = vmatprep.subr.bf16.mxu0 0
        %525 = vmatpush2.bf16.msra.mxu0 0
        %526 = vmatprep.subr.bf16.mxu0 0
        %527 = vmatpush2.bf16.msra.mxu0 0
        %528 = vmatprep.subr.bf16.mxu0 0
        %529 = vmatpush2.bf16.msra.mxu0 0
        %530 = vmatprep.subr.bf16.mxu0 0
        %531 = vmatpush2.bf16.msra.mxu0 0
        %532 = vmatprep.subr.bf16.mxu0 0
        %533 = vmatpush2.bf16.msra.mxu0 0
        %534 = vmatprep.mubr.bf16.mxu0 0
        %535 = vmatmul.mubr.bf16.gmra.mxu0 %v475
        %v536 = vpop.f32.mrf.mxu0
        %v537 = vadd.f32 %v441, %v536
        %v538 = vpop.f32.mrf.mxu0
        %v539 = vadd.f32 %v441, %v538
        %v540 = vpop.f32.mrf.mxu0
        %v541 = vadd.f32 %v446, %v540
        %v542 = vpop.f32.mrf.mxu0
        %v543 = vadd.f32 %v446, %v542
        %544 = vdwg.mxu0
        %545 = vmatprep.subr.bf16.mxu0 0
        %546 = vmatpush1.bf16.msra.mxu0 0
        %547 = vmatprep.subr.bf16.mxu0 0
        %548 = vmatpush1.bf16.msra.mxu0 0
        %549 = vmatprep.subr.bf16.mxu0 0
        %550 = vmatpush1.bf16.msra.mxu0 0
        %551 = vmatprep.subr.bf16.mxu0 0
        %552 = vmatpush1.bf16.msra.mxu0 0
        %553 = vmatprep.subr.bf16.mxu0 0
        %554 = vmatpush1.bf16.msra.mxu0 0
        %555 = vmatprep.subr.bf16.mxu0 0
        %556 = vmatpush1.bf16.msra.mxu0 0
        %557 = vmatprep.subr.bf16.mxu0 0
        %558 = vmatpush1.bf16.msra.mxu0 0
        %559 = vmatprep.subr.bf16.mxu0 %v488
        %560 = vmatpush1.bf16.msra.mxu0 %v485
        %561 = vmatprep.subr.bf16.mxu0 0
        %562 = vmatpush2.bf16.msra.mxu0 0
        %563 = vmatprep.subr.bf16.mxu0 0
        %564 = vmatpush2.bf16.msra.mxu0 0
        %565 = vmatprep.subr.bf16.mxu0 0
        %566 = vmatpush2.bf16.msra.mxu0 0
        %567 = vmatprep.subr.bf16.mxu0 0
        %568 = vmatpush2.bf16.msra.mxu0 0
        %569 = vmatprep.subr.bf16.mxu0 0
        %570 = vmatpush2.bf16.msra.mxu0 0
        %571 = vmatprep.subr.bf16.mxu0 0
        %572 = vmatpush2.bf16.msra.mxu0 0
        %573 = vmatprep.subr.bf16.mxu0 0
        %574 = vmatpush2.bf16.msra.mxu0 0
        %575 = vmatprep.subr.bf16.mxu0 0
        %576 = vmatpush2.bf16.msra.mxu0 0
        %577 = vmatprep.mubr.bf16.mxu0 0
        %578 = vmatmul.mubr.bf16.gmra.mxu0 %v475
        %v579 = vpop.f32.mrf.mxu0
        %v580 = vadd.f32 %v441, %v579
        %v581 = vpop.f32.mrf.mxu0
        %v582 = vadd.f32 %v441, %v581
        %v583 = vpop.f32.mrf.mxu0
        %v584 = vadd.f32 %v446, %v583
        %v585 = vpop.f32.mrf.mxu0
        %v586 = vadd.f32 %v446, %v585
        %587 = vdwg.mxu0
        %588 = vmatprep.subr.bf16.mxu0 0
        %589 = vmatpush1.bf16.msra.mxu0 0
        %590 = vmatprep.subr.bf16.mxu0 0
        %591 = vmatpush1.bf16.msra.mxu0 0
        %592 = vmatprep.subr.bf16.mxu0 0
        %593 = vmatpush1.bf16.msra.mxu0 0
        %594 = vmatprep.subr.bf16.mxu0 0
        %595 = vmatpush1.bf16.msra.mxu0 0
        %596 = vmatprep.subr.bf16.mxu0 0
        %597 = vmatpush1.bf16.msra.mxu0 0
        %598 = vmatprep.subr.bf16.mxu0 0
        %599 = vmatpush1.bf16.msra.mxu0 0
        %600 = vmatprep.subr.bf16.mxu0 0
        %601 = vmatpush1.bf16.msra.mxu0 0
        %602 = vmatprep.subr.bf16.mxu0 %v494
        %603 = vmatpush1.bf16.msra.mxu0 %v491
        %604 = vmatprep.subr.bf16.mxu0 0
        %605 = vmatpush2.bf16.msra.mxu0 0
        %606 = vmatprep.subr.bf16.mxu0 0
        %607 = vmatpush2.bf16.msra.mxu0 0
        %608 = vmatprep.subr.bf16.mxu0 0
        %609 = vmatpush2.bf16.msra.mxu0 0
        %610 = vmatprep.subr.bf16.mxu0 0
        %611 = vmatpush2.bf16.msra.mxu0 0
        %612 = vmatprep.subr.bf16.mxu0 0
        %613 = vmatpush2.bf16.msra.mxu0 0
        %614 = vmatprep.subr.bf16.mxu0 0
        %615 = vmatpush2.bf16.msra.mxu0 0
        %616 = vmatprep.subr.bf16.mxu0 0
        %617 = vmatpush2.bf16.msra.mxu0 0
        %618 = vmatprep.subr.bf16.mxu0 0
        %619 = vmatpush2.bf16.msra.mxu0 0
        %620 = vmatprep.mubr.bf16.mxu0 0
        %621 = vmatmul.mubr.bf16.gmra.mxu0 %v475
        %v622 = vpop.f32.mrf.mxu0
        %v623 = vadd.f32 %v441, %v622
        %v624 = vpop.f32.mrf.mxu0
        %v625 = vadd.f32 %v441, %v624
        %v626 = vpop.f32.mrf.mxu0
        %v627 = vadd.f32 %v446, %v626
        %v628 = vpop.f32.mrf.mxu0
        %v629 = vadd.f32 %v446, %v628
        %630 = vdwg.mxu0
        %631 = vmatprep.subr.bf16.mxu0 0
        %632 = vmatpush1.bf16.msra.mxu0 0
        %633 = vmatprep.subr.bf16.mxu0 0
        %634 = vmatpush1.bf16.msra.mxu0 0
        %635 = vmatprep.subr.bf16.mxu0 0
        %636 = vmatpush1.bf16.msra.mxu0 0
        %637 = vmatprep.subr.bf16.mxu0 0
        %638 = vmatpush1.bf16.msra.mxu0 0
        %639 = vmatprep.subr.bf16.mxu0 0
        %640 = vmatpush1.bf16.msra.mxu0 0
        %641 = vmatprep.subr.bf16.mxu0 0
        %642 = vmatpush1.bf16.msra.mxu0 0
        %643 = vmatprep.subr.bf16.mxu0 0
        %644 = vmatpush1.bf16.msra.mxu0 0
        %645 = vmatprep.subr.bf16.mxu0 %v500
        %646 = vmatpush1.bf16.msra.mxu0 %v497
        %647 = vmatprep.subr.bf16.mxu0 0
        %648 = vmatpush2.bf16.msra.mxu0 0
        %649 = vmatprep.subr.bf16.mxu0 0
        %650 = vmatpush2.bf16.msra.mxu0 0
        %651 = vmatprep.subr.bf16.mxu0 0
        %652 = vmatpush2.bf16.msra.mxu0 0
        %653 = vmatprep.subr.bf16.mxu0 0
        %654 = vmatpush2.bf16.msra.mxu0 0
        %655 = vmatprep.subr.bf16.mxu0 0
        %656 = vmatpush2.bf16.msra.mxu0 0
        %657 = vmatprep.subr.bf16.mxu0 0
        %658 = vmatpush2.bf16.msra.mxu0 0
        %659 = vmatprep.subr.bf16.mxu0 0
        %660 = vmatpush2.bf16.msra.mxu0 0
        %661 = vmatprep.subr.bf16.mxu0 0
        %662 = vmatpush2.bf16.msra.mxu0 0
        %663 = vmatprep.mubr.bf16.mxu0 0
        %664 = vmatmul.mubr.bf16.gmra.mxu0 %v475
        %v665 = vpop.f32.mrf.mxu0
        %v666 = vadd.f32 %v441, %v665
        %v667 = vpop.f32.mrf.mxu0
        %v668 = vadd.f32 %v441, %v667
        %v669 = vpop.f32.mrf.mxu0
        %v670 = vadd.f32 %v446, %v669
        %v671 = vpop.f32.mrf.mxu0
        %v672 = vadd.f32 %v446, %v671
        %673 = vdwg.mxu0
        %v674 = vmax.f32 %v537, 0.0
        %v675 = vmax.f32 %v539, 0.0
        %v676 = vmax.f32 %v580, 0.0
        %v677 = vmax.f32 %v582, 0.0
        %v678 = vmax.f32 %v623, 0.0
        %v679 = vmax.f32 %v625, 0.0
        %v680 = vmax.f32 %v666, 0.0
        %v681 = vmax.f32 %v668, 0.0
        %v682 = vmax.f32 %v541, 0.0
        %v683 = vmax.f32 %v543, 0.0
        %v684 = vmax.f32 %v584, 0.0
        %v685 = vmax.f32 %v586, 0.0
        %v686 = vmax.f32 %v627, 0.0
        %v687 = vmax.f32 %v629, 0.0
        %v688 = vmax.f32 %v670, 0.0
        %v689 = vmax.f32 %v672, 0.0
        %v690 = vpack.c.bf16 %v682, %v674
        %v691 = vpack.c.bf16 %v683, %v675
        %v692 = vpack.c.bf16 %v684, %v676
        %v693 = vpack.c.bf16 %v685, %v677
        %v694 = vpack.c.bf16 %v686, %v678
        %v695 = vpack.c.bf16 %v687, %v679
        %v696 = vpack.c.bf16 %v688, %v680
        %v697 = vpack.c.bf16 %v689, %v681
        %699 = vset.pattern.permute.xlu0 0
        %700 = vperm.xlu0 %699, %v434
        %v701 = vpop.permute.xlu0 %700
        %704 = vset.pattern.permute.xlu0 0
        %705 = vperm.xlu0 %704, %v435
        %v706 = vpop.permute.xlu0 %705
        %709 = vset.pattern.permute.xlu0 0
        %710 = vperm.xlu0 %709, %v436
        %v711 = vpop.permute.xlu0 %710
        %714 = vset.pattern.permute.xlu0 0
        %715 = vperm.xlu0 %714, %v437
        %v716 = vpop.permute.xlu0 %715
        %v722 = vunpack.c.l.b16 %v430
        %v723 = vunpack.c.l.b16 %v431
        %v724 = vunpack.c.l.b16 %v432
        %v725 = vunpack.c.l.b16 %v433
        %v726 = vpack.c.b16 %v723, %v722
        %v727 = vpack.c.b16 %v725, %v724
        %vm728 = vcmask 130048
        %v730 = vsel %vm728, %v726, 0
        %v733 = vsel %vm728, %v727, 0
        %735 = vmatprep.subr.bf16.mxu0 0
        %736 = vmatpush1.bf16.msra.mxu0 0
        %737 = vmatprep.subr.bf16.mxu0 0
        %738 = vmatpush1.bf16.msra.mxu0 0
        %739 = vmatprep.subr.bf16.mxu0 0
        %740 = vmatpush1.bf16.msra.mxu0 0
        %741 = vmatprep.subr.bf16.mxu0 0
        %742 = vmatpush1.bf16.msra.mxu0 0
        %743 = vmatprep.subr.bf16.mxu0 0
        %744 = vmatpush1.bf16.msra.mxu0 0
        %745 = vmatprep.subr.bf16.mxu0 0
        %746 = vmatpush1.bf16.msra.mxu0 0
        %747 = vmatprep.subr.bf16.mxu0 0
        %748 = vmatpush1.bf16.msra.mxu0 0
        %749 = vmatprep.subr.bf16.mxu0 %v691
        %750 = vmatpush1.bf16.msra.mxu0 %v690
        %751 = vmatprep.subr.bf16.mxu0 0
        %752 = vmatpush2.bf16.msra.mxu0 0
        %753 = vmatprep.subr.bf16.mxu0 0
        %754 = vmatpush2.bf16.msra.mxu0 0
        %755 = vmatprep.subr.bf16.mxu0 0
        %756 = vmatpush2.bf16.msra.mxu0 0
        %757 = vmatprep.subr.bf16.mxu0 0
        %758 = vmatpush2.bf16.msra.mxu0 0
        %759 = vmatprep.subr.bf16.mxu0 0
        %760 = vmatpush2.bf16.msra.mxu0 0
        %761 = vmatprep.subr.bf16.mxu0 0
        %762 = vmatpush2.bf16.msra.mxu0 0
        %763 = vmatprep.subr.bf16.mxu0 0
        %764 = vmatpush2.bf16.msra.mxu0 0
        %765 = vmatprep.subr.bf16.mxu0 0
        %766 = vmatpush2.bf16.msra.mxu0 0
        %767 = vmatprep.mubr.bf16.mxu0 0
        %768 = vmatmul.mubr.bf16.gmra.mxu0 %v730
        %v769 = vpop.f32.mrf.mxu0
        %v770 = vadd.f32 %v701, %v769
        %v771 = vpop.f32.mrf.mxu0
        %v772 = vadd.f32 %v701, %v771
        %v773 = vpop.f32.mrf.mxu0
        %v774 = vadd.f32 %v706, %v773
        %v775 = vpop.f32.mrf.mxu0
        %v776 = vadd.f32 %v706, %v775
        %777 = vmatprep.mubr.bf16.mxu0 0
        %778 = vmatmul.mubr.bf16.gmra.mxu0 %v733
        %v779 = vpop.f32.mrf.mxu0
        %v780 = vadd.f32 %v711, %v779
        %v781 = vpop.f32.mrf.mxu0
        %v782 = vadd.f32 %v711, %v781
        %v783 = vpop.f32.mrf.mxu0
        %v784 = vadd.f32 %v716, %v783
        %v785 = vpop.f32.mrf.mxu0
        %v786 = vadd.f32 %v716, %v785
        %787 = vdwg.mxu0
        %788 = vmatprep.subr.bf16.mxu0 0
        %789 = vmatpush1.bf16.msra.mxu0 0
        %790 = vmatprep.subr.bf16.mxu0 0
        %791 = vmatpush1.bf16.msra.mxu0 0
        %792 = vmatprep.subr.bf16.mxu0 0
        %793 = vmatpush1.bf16.msra.mxu0 0
        %794 = vmatprep.subr.bf16.mxu0 0
        %795 = vmatpush1.bf16.msra.mxu0 0
        %796 = vmatprep.subr.bf16.mxu0 0
        %797 = vmatpush1.bf16.msra.mxu0 0
        %798 = vmatprep.subr.bf16.mxu0 0
        %799 = vmatpush1.bf16.msra.mxu0 0
        %800 = vmatprep.subr.bf16.mxu0 0
        %801 = vmatpush1.bf16.msra.mxu0 0
        %802 = vmatprep.subr.bf16.mxu0 %v693
        %803 = vmatpush1.bf16.msra.mxu0 %v692
        %804 = vmatprep.subr.bf16.mxu0 0
        %805 = vmatpush2.bf16.msra.mxu0 0
        %806 = vmatprep.subr.bf16.mxu0 0
        %807 = vmatpush2.bf16.msra.mxu0 0
        %808 = vmatprep.subr.bf16.mxu0 0
        %809 = vmatpush2.bf16.msra.mxu0 0
        %810 = vmatprep.subr.bf16.mxu0 0
        %811 = vmatpush2.bf16.msra.mxu0 0
        %812 = vmatprep.subr.bf16.mxu0 0
        %813 = vmatpush2.bf16.msra.mxu0 0
        %814 = vmatprep.subr.bf16.mxu0 0
        %815 = vmatpush2.bf16.msra.mxu0 0
        %816 = vmatprep.subr.bf16.mxu0 0
        %817 = vmatpush2.bf16.msra.mxu0 0
        %818 = vmatprep.subr.bf16.mxu0 0
        %819 = vmatpush2.bf16.msra.mxu0 0
        %820 = vmatprep.mubr.bf16.mxu0 0
        %821 = vmatmul.mubr.bf16.gmra.mxu0 %v730
        %v822 = vpop.f32.mrf.mxu0
        %v823 = vadd.f32 %v701, %v822
        %v824 = vpop.f32.mrf.mxu0
        %v825 = vadd.f32 %v701, %v824
        %v826 = vpop.f32.mrf.mxu0
        %v827 = vadd.f32 %v706, %v826
        %v828 = vpop.f32.mrf.mxu0
        %v829 = vadd.f32 %v706, %v828
        %830 = vmatprep.mubr.bf16.mxu0 0
        %831 = vmatmul.mubr.bf16.gmra.mxu0 %v733
        %v832 = vpop.f32.mrf.mxu0
        %v833 = vadd.f32 %v711, %v832
        %v834 = vpop.f32.mrf.mxu0
        %v835 = vadd.f32 %v711, %v834
        %v836 = vpop.f32.mrf.mxu0
        %v837 = vadd.f32 %v716, %v836
        %v838 = vpop.f32.mrf.mxu0
        %v839 = vadd.f32 %v716, %v838
        %840 = vdwg.mxu0
        %841 = vmatprep.subr.bf16.mxu0 0
        %842 = vmatpush1.bf16.msra.mxu0 0
        %843 = vmatprep.subr.bf16.mxu0 0
        %844 = vmatpush1.bf16.msra.mxu0 0
        %845 = vmatprep.subr.bf16.mxu0 0
        %846 = vmatpush1.bf16.msra.mxu0 0
        %847 = vmatprep.subr.bf16.mxu0 0
        %848 = vmatpush1.bf16.msra.mxu0 0
        %849 = vmatprep.subr.bf16.mxu0 0
        %850 = vmatpush1.bf16.msra.mxu0 0
        %851 = vmatprep.subr.bf16.mxu0 0
        %852 = vmatpush1.bf16.msra.mxu0 0
        %853 = vmatprep.subr.bf16.mxu0 0
        %854 = vmatpush1.bf16.msra.mxu0 0
        %855 = vmatprep.subr.bf16.mxu0 %v695
        %856 = vmatpush1.bf16.msra.mxu0 %v694
        %857 = vmatprep.subr.bf16.mxu0 0
        %858 = vmatpush2.bf16.msra.mxu0 0
        %859 = vmatprep.subr.bf16.mxu0 0
        %860 = vmatpush2.bf16.msra.mxu0 0
        %861 = vmatprep.subr.bf16.mxu0 0
        %862 = vmatpush2.bf16.msra.mxu0 0
        %863 = vmatprep.subr.bf16.mxu0 0
        %864 = vmatpush2.bf16.msra.mxu0 0
        %865 = vmatprep.subr.bf16.mxu0 0
        %866 = vmatpush2.bf16.msra.mxu0 0
        %867 = vmatprep.subr.bf16.mxu0 0
        %868 = vmatpush2.bf16.msra.mxu0 0
        %869 = vmatprep.subr.bf16.mxu0 0
        %870 = vmatpush2.bf16.msra.mxu0 0
        %871 = vmatprep.subr.bf16.mxu0 0
        %872 = vmatpush2.bf16.msra.mxu0 0
        %873 = vmatprep.mubr.bf16.mxu0 0
        %874 = vmatmul.mubr.bf16.gmra.mxu0 %v730
        %v875 = vpop.f32.mrf.mxu0
        %v876 = vadd.f32 %v701, %v875
        %v877 = vpop.f32.mrf.mxu0
        %v878 = vadd.f32 %v701, %v877
        %v879 = vpop.f32.mrf.mxu0
        %v880 = vadd.f32 %v706, %v879
        %v881 = vpop.f32.mrf.mxu0
        %v882 = vadd.f32 %v706, %v881
        %883 = vmatprep.mubr.bf16.mxu0 0
        %884 = vmatmul.mubr.bf16.gmra.mxu0 %v733
        %v885 = vpop.f32.mrf.mxu0
        %v886 = vadd.f32 %v711, %v885
        %v887 = vpop.f32.mrf.mxu0
        %v888 = vadd.f32 %v711, %v887
        %v889 = vpop.f32.mrf.mxu0
        %v890 = vadd.f32 %v716, %v889
        %v891 = vpop.f32.mrf.mxu0
        %v892 = vadd.f32 %v716, %v891
        %893 = vdwg.mxu0
        %894 = vmatprep.subr.bf16.mxu0 0
        %895 = vmatpush1.bf16.msra.mxu0 0
        %896 = vmatprep.subr.bf16.mxu0 0
        %897 = vmatpush1.bf16.msra.mxu0 0
        %898 = vmatprep.subr.bf16.mxu0 0
        %899 = vmatpush1.bf16.msra.mxu0 0
        %900 = vmatprep.subr.bf16.mxu0 0
        %901 = vmatpush1.bf16.msra.mxu0 0
        %902 = vmatprep.subr.bf16.mxu0 0
        %903 = vmatpush1.bf16.msra.mxu0 0
        %904 = vmatprep.subr.bf16.mxu0 0
        %905 = vmatpush1.bf16.msra.mxu0 0
        %906 = vmatprep.subr.bf16.mxu0 0
        %907 = vmatpush1.bf16.msra.mxu0 0
        %908 = vmatprep.subr.bf16.mxu0 %v697
        %909 = vmatpush1.bf16.msra.mxu0 %v696
        %910 = vmatprep.subr.bf16.mxu0 0
        %911 = vmatpush2.bf16.msra.mxu0 0
        %912 = vmatprep.subr.bf16.mxu0 0
        %913 = vmatpush2.bf16.msra.mxu0 0
        %914 = vmatprep.subr.bf16.mxu0 0
        %915 = vmatpush2.bf16.msra.mxu0 0
        %916 = vmatprep.subr.bf16.mxu0 0
        %917 = vmatpush2.bf16.msra.mxu0 0
        %918 = vmatprep.subr.bf16.mxu0 0
        %919 = vmatpush2.bf16.msra.mxu0 0
        %920 = vmatprep.subr.bf16.mxu0 0
        %921 = vmatpush2.bf16.msra.mxu0 0
        %922 = vmatprep.subr.bf16.mxu0 0
        %923 = vmatpush2.bf16.msra.mxu0 0
        %924 = vmatprep.subr.bf16.mxu0 0
        %925 = vmatpush2.bf16.msra.mxu0 0
        %926 = vmatprep.mubr.bf16.mxu0 0
        %927 = vmatmul.mubr.bf16.gmra.mxu0 %v730
        %v928 = vpop.f32.mrf.mxu0
        %v929 = vadd.f32 %v701, %v928
        %v930 = vpop.f32.mrf.mxu0
        %v931 = vadd.f32 %v701, %v930
        %v932 = vpop.f32.mrf.mxu0
        %v933 = vadd.f32 %v706, %v932
        %v934 = vpop.f32.mrf.mxu0
        %v935 = vadd.f32 %v706, %v934
        %936 = vmatprep.mubr.bf16.mxu0 0
        %937 = vmatmul.mubr.bf16.gmra.mxu0 %v733
        %v938 = vpop.f32.mrf.mxu0
        %v939 = vadd.f32 %v711, %v938
        %v940 = vpop.f32.mrf.mxu0
        %v941 = vadd.f32 %v711, %v940
        %v942 = vpop.f32.mrf.mxu0
        %v943 = vadd.f32 %v716, %v942
        %v944 = vpop.f32.mrf.mxu0
        %v945 = vadd.f32 %v716, %v944
        %946 = vdwg.mxu0
        %v947 = vmax.f32 %v770, 0.0
        %v948 = vmax.f32 %v772, 0.0
        %v949 = vmax.f32 %v823, 0.0
        %v950 = vmax.f32 %v825, 0.0
        %v951 = vmax.f32 %v876, 0.0
        %v952 = vmax.f32 %v878, 0.0
        %v953 = vmax.f32 %v929, 0.0
        %v954 = vmax.f32 %v931, 0.0
        %v955 = vmax.f32 %v774, 0.0
        %v956 = vmax.f32 %v776, 0.0
        %v957 = vmax.f32 %v827, 0.0
        %v958 = vmax.f32 %v829, 0.0
        %v959 = vmax.f32 %v880, 0.0
        %v960 = vmax.f32 %v882, 0.0
        %v961 = vmax.f32 %v933, 0.0
        %v962 = vmax.f32 %v935, 0.0
        %v963 = vmax.f32 %v780, 0.0
        %v964 = vmax.f32 %v782, 0.0
        %v965 = vmax.f32 %v833, 0.0
        %v966 = vmax.f32 %v835, 0.0
        %v967 = vmax.f32 %v886, 0.0
        %v968 = vmax.f32 %v888, 0.0
        %v969 = vmax.f32 %v939, 0.0
        %v970 = vmax.f32 %v941, 0.0
        %v971 = vmax.f32 %v784, 0.0
        %v972 = vmax.f32 %v786, 0.0
        %v973 = vmax.f32 %v837, 0.0
        %v974 = vmax.f32 %v839, 0.0
        %v975 = vmax.f32 %v890, 0.0
        %v976 = vmax.f32 %v892, 0.0
        %v977 = vmax.f32 %v943, 0.0
        %v978 = vmax.f32 %v945, 0.0
        %v979 = vmax.f32 %v947, %v948
        %v980 = vmax.f32 %v955, %v956
        %v981 = vmax.f32 %v963, %v964
        %v982 = vmax.f32 %v971, %v972
        %v983 = vmax.f32 %v979, %v949
        %v984 = vmax.f32 %v980, %v957
        %v985 = vmax.f32 %v981, %v965
        %v986 = vmax.f32 %v982, %v973
        %v987 = vmax.f32 %v983, %v950
        %v988 = vmax.f32 %v984, %v958
        %v989 = vmax.f32 %v985, %v966
        %v990 = vmax.f32 %v986, %v974
        %v991 = vmax.f32 %v987, %v951
        %v992 = vmax.f32 %v988, %v959
        %v993 = vmax.f32 %v989, %v967
        %v994 = vmax.f32 %v990, %v975
        %v995 = vmax.f32 %v991, %v952
        %v996 = vmax.f32 %v992, %v960
        %v997 = vmax.f32 %v993, %v968
        %v998 = vmax.f32 %v994, %v976
        %v999 = vmax.f32 %v995, %v953
        %v1000 = vmax.f32 %v996, %v961
        %v1001 = vmax.f32 %v997, %v969
        %v1002 = vmax.f32 %v998, %v977
        %v1003 = vmax.f32 %v999, %v954
        %v1004 = vmax.f32 %v1000, %v962
        %v1005 = vmax.f32 %v1001, %v970
        %v1006 = vmax.f32 %v1002, %v978
        %v1007 = vld [vmem:[%s399] sm:$0x1]
        %v1009 = vlaneseq
        %v1010 = vshrl.u32 %v1009, 7
        %v1011 = vsub.s32 0, %v1010
        %v1012 = vrot.slane %v1007, %v1011
        %v1014 = vmul.f32 %v1003, %v1012
        %v1015 = vmul.f32 %v1004, %v1012
        %v1016 = vmul.f32 %v1005, %v1012
        %v1017 = vmul.f32 %v1006, %v1012
        %1018 = vst [vmem:[%s376] sm:$0xff] %v1014
        %1019 = vst [vmem:[%s376 + $0x8] sm:$0xff] %v1015
        %1020 = vst [vmem:[%s376 + $0x10] sm:$0xff] %v1016
        %1021 = vst [vmem:[%s376 + $0x18] sm:$0xff] %v1017
        %s1022 = sand.u32 %s215, 1
        %s1023 = scalar_lea.sflag [#allocation3], %s1022
        %s1024 = sand.u32 %s215, 1
        %s1025 = smul.addr %s1024, 32
        %s1026 = scalar_lea.vmem [#allocation2], %s1025
        // Predicated region
        $region45: #{tpu_custom_call.1} parent=43 // pred_check
          %p1027 = pneg %p225
        $region46: #{tpu_custom_call.1} parent=43 // pred_check_branch
          %1029 = sbr.rel (%p1027) target = $region48
        $region47: #{tpu_custom_call.1} parent=43 // pred_region
          %s1030 = smul.u32 4, %s25
          %s1032 = ssub.s32 512, 512
          %1033 = vsyncadd %s1023, %s1032
          %s1034 = sadd.s32 %s27, %s1030
          %s1035 = smul.addr %s26, 8
          %s1036 = sadd.s32 %s1034, %s1035
          %s1037 = smul.addr %s1036, 128
          %s1038 = scalar_lea.hbm %s6, %s1037
          %s1039 = sshll.u32 %s1026, 4
          %s1040 = int_to_ptr.vmem [resolvable:$true] %s1039
          %1045 = dma.vmem_to_hbm [thread:$0]  %s1040, 512, %s1038, %s1023, 128, 128, 8
        $region48: #{tpu_custom_call.1} parent=43 // pred_fallthru
          _
      $region44: #{tpu_custom_call.1} parent=5 // pred_fallthru
        _
      %p1046 = scmp.le.s32.totalorder 2, %s15
      // Predicated region
      $region49: #{tpu_custom_call.1} parent=5 // pred_check
        %p1047 = pneg %p1046
      $region50: #{tpu_custom_call.1} parent=5 // pred_check_branch
        %1049 = sbr.rel (%p1047) target = $region52
      $region51: #{tpu_custom_call.1} parent=5 // pred_region
        %s1050 = ssub.s32 %s15, 2
        // Predicated region
        $region53: #{tpu_custom_call.1} parent=51 // pred_check
          %p1051 = pneg %p231
        $region54: #{tpu_custom_call.1} parent=51 // pred_check_branch
          %1053 = sbr.rel (%p1051) target = $region56
        $region55: #{tpu_custom_call.1} parent=51 // pred_region
          %s1054 = sand.u32 %s216, 1
          %s1055 = scalar_lea.sflag [#allocation3], %s1054
          %s1056 = sand.u32 %s216, 1
          %s1057 = smul.addr %s1056, 32
          %s1058 = scalar_lea.vmem [#allocation2], %s1057
          %1059 = dma.done %s1055, 512
        $region56: #{tpu_custom_call.1} parent=51 // pred_fallthru
          _
      $region52: #{tpu_custom_call.1} parent=5 // pred_fallthru
        _
    $region6: #{tpu_custom_call.1} parent=1 // loop_footer
      %s19 = sadd.s32 1, %s15
    $region7: #{tpu_custom_call.1} parent=1 // loop_footer_branch
      %14 = sbr.rel target = $region3
    $region8: #{tpu_custom_call.1} parent=1 // loop_exit
      _
    %1060 = vsyncpa [#allocation3], 1
    %s1061 = scalar_lea.sflag [#allocation3], 1
    %1062 = vsyncpa %s1061, 1

</llo_original>
